<compile_context>
chip_gen: v5e
topology: v5e:2x2
jax: 0.10.0
libtpu: 0.0.40
codegen_flags: <defaults>
</compile_context>

<pallas_src>
import numpy as np
import jax
import jax.numpy as jnp
from jax.experimental import pallas as pl
from jax.experimental.pallas import tpu as pltpu


# ---------------------------------------------------------------------------
# Exact PyTorch bicubic (align_corners=False, a=-0.75) interpolation matrix
# ---------------------------------------------------------------------------
def _bicubic_weight_matrix(out_size: int, in_size: int) -> np.ndarray:
    """(out_size, in_size) matrix M with  resized = M @ signal  matching
    torch.nn.functional.interpolate(mode='bicubic', align_corners=False)."""
    if out_size == in_size:
        return np.eye(out_size, dtype=np.float32)
    A = -0.75  # PyTorch's cubic convolution constant

    def cc1(t):  # |x| <= 1 branch
        return ((A + 2.0) * t - (A + 3.0)) * t * t + 1.0

    def cc2(t):  # 1 < |x| < 2 branch
        return ((A * t - 5.0 * A) * t + 8.0 * A) * t - 4.0 * A

    scale = in_size / out_size
    i = np.arange(out_size, dtype=np.float64)
    src = (i + 0.5) * scale - 0.5
    fl = np.floor(src)
    t = src - fl
    coeffs = np.stack([cc2(t + 1.0), cc1(t), cc1(1.0 - t), cc2(2.0 - t)], axis=1)
    taps = fl[:, None].astype(np.int64) + np.array([-1, 0, 1, 2])
    taps = np.clip(taps, 0, in_size - 1)  # border replicate (clamped access)
    M = np.zeros((out_size, in_size), dtype=np.float64)
    rows = np.arange(out_size)
    for k in range(4):
        np.add.at(M, (rows, taps[:, k]), coeffs[:, k])
    return M.astype(np.float32)


def _vmem_capacity_bytes() -> int:
    try:
        cap = getattr(pltpu.get_tpu_info(), "vmem_capacity_bytes", None)
        if cap:
            return int(cap)
    except Exception:
        pass
    return 64 * 1024 * 1024  # conservative default = v7x per-TensorCore VMEM


def _sublane(itemsize: int) -> int:
    # dense second-to-last block dim: f32 -> 8, bf16/f16 -> 16, int8/fp8 -> 32
    return {1: 32, 2: 16, 4: 8}.get(itemsize, 8)


# ---------------------------------------------------------------------------
# Kernel A: one-shot bicubic resize of the bias as a single tiled MXU matmul
# ---------------------------------------------------------------------------
def _resize_kernel(b_ref, k_ref, o_ref):
    # b_ref: (c_blk, K), k_ref: (K, hw_blk), o_ref: (c_blk, hw_blk)
    o_ref[...] = jnp.dot(
        b_ref[...], k_ref[...], preferred_element_type=jnp.float32
    ).astype(o_ref.dtype)


def _resize_bias(bias3: jax.Array, H: int, W: int, out_dtype) -> jax.Array:
    """bias3: (C, Hb, Wb) -> (C, H*W), PyTorch-exact bicubic, in Pallas."""
    C, Hb, Wb = bias3.shape
    K, HW = Hb * Wb, H * W

    wh = _bicubic_weight_matrix(H, Hb)           # (H, Hb)
    ww = _bicubic_weight_matrix(W, Wb)           # (W, Wb)
    # kron[(h*W+w), (j*Wb+k)] = wh[h,j] * ww[w,k]; transposed so resized = bias @ wk
    wk = jnp.asarray(np.kron(wh, ww).T)          # (K, HW)
    # TODO(synk): for extreme Hb*Wb*H*W the kron operand gets large; a
    # channel-batched two-stage (rows then cols) matmul would be preferable there.
    bflat = bias3.reshape(C, K).astype(jnp.float32)

    budget = 2 * 1024 * 1024                     # per-block bytes (f32)
    if K * HW * 4 <= budget:
        hw_blk = HW                              # full dim -> always legal
    else:
        hw_blk = max(128, (budget // (K * 4)) // 128 * 128)
    rows = max(8, budget // ((K + hw_blk) * 4))
    c_blk = C if C <= rows else (rows // 8) * 8

    # Channel axis innermost: the (K, hw_blk) kron block index is constant
    # across consecutive steps, so Pallas skips its re-DMA.
    grid = (pl.cdiv(HW, hw_blk), pl.cdiv(C, c_blk))
    grid_spec = pltpu.PrefetchScalarGridSpec(
        num_scalar_prefetch=0,
        grid=grid,
        in_specs=[
            pl.BlockSpec((c_blk, K), lambda hi, ci: (ci, 0)),
            pl.BlockSpec((K, hw_blk), lambda hi, ci: (0, hi)),
        ],
        out_specs=pl.BlockSpec((c_blk, hw_blk), lambda hi, ci: (ci, hi)),
    )
    return pl.pallas_call(
        _resize_kernel,
        out_shape=jax.ShapeDtypeStruct((C, HW), out_dtype),
        grid_spec=grid_spec,
        compiler_params=pltpu.CompilerParams(
            dimension_semantics=("parallel", "parallel"),
            vmem_limit_bytes=32 * 1024 * 1024),
    )(bflat, wk)


# ---------------------------------------------------------------------------
# Kernel B: lane/sublane-dense streaming broadcast-add (HBM-bound hot path)
# ---------------------------------------------------------------------------
def _add_kernel(x_ref, b_ref, o_ref):
    # x_ref/o_ref: (n_blk, c_blk, hw_blk); b_ref: (c_blk, hw_blk) broadcast over n
    o_ref[...] = x_ref[...] + b_ref[...]


def _pick_add_tiles(N: int, C: int, HW: int, itemsize: int, budget: int):
    """Pick (n_blk, c_blk, hw_blk). Last two dims are (sub,128)-dense or full,
    so blocks are always legal and vreg-dense; cdiv grid handles ragged edges."""
    sub = _sublane(itemsize)
    if HW * itemsize * sub <= budget:
        hw_blk = HW                                   # full last dim -> legal
    else:
        hw_blk = max(128, (budget // (sub * itemsize)) // 128 * 128)

    if hw_blk == HW:
        if C * HW * itemsize <= budget:
            c_blk = C                                 # full dim -> legal
        else:
            rows = budget // (HW * itemsize)          # >= sub by branch condition
            c_blk = max(sub, (rows // sub) * sub)
    else:
        c_blk = C if C < sub else sub                 # full dim or sublane-dense

    if c_blk == C and hw_blk == HW:
        n_blk = min(N, max(1, budget // (C * HW * itemsize)))
    else:
        n_blk = 1
    return n_blk, c_blk, hw_blk


def bias2d_forward(x: jax.Array, bias: jax.Array, *, donate_x: bool = False) -> jax.Array:
    """x: (N, C, H, W); bias: (1, C, Hb, Wb). Returns x + bicubic_resize(bias)."""
    N, C, H, W = x.shape
    _, Cb, Hb, Wb = bias.shape
    assert Cb == C
    HW = H * W

    # Resize once (skip entirely when sizes match, as the module does).
    if (H, W) == (Hb, Wb):
        b2 = bias[0].reshape(C, HW).astype(x.dtype)
    else:
        b2 = _resize_bias(bias[0], H, W, x.dtype)     # (C, HW)

    x3 = x.reshape(N, C, HW)                          # contiguous: free view
    itemsize = jnp.dtype(x.dtype).itemsize
    cap = _vmem_capacity_bytes()
    # ~4 MiB blocks on v7x (64 MiB VMEM), ~8 MiB on v5e/v6e (128 MiB VMEM).
    budget = max(2 * 1024 * 1024, min(8 * 1024 * 1024, cap // 16))
    n_blk, c_blk, hw_blk = _pick_add_tiles(N, C, HW, itemsize, budget)

    # Batch axis innermost: the bias block index (ci, hi) is constant across
    # consecutive steps, so the bias is read from HBM exactly once in total.
    grid = (pl.cdiv(C, c_blk), pl.cdiv(HW, hw_blk), pl.cdiv(N, n_blk))
    grid_spec = pltpu.PrefetchScalarGridSpec(
        num_scalar_prefetch=0,
        grid=grid,
        in_specs=[
            pl.BlockSpec((n_blk, c_blk, hw_blk), lambda ci, hi, ni: (ni, ci, hi)),
            pl.BlockSpec((c_blk, hw_blk), lambda ci, hi, ni: (ci, hi)),
        ],
        out_specs=pl.BlockSpec((n_blk, c_blk, hw_blk), lambda ci, hi, ni: (ni, ci, hi)),
    )
    out3 = pl.pallas_call(
        _add_kernel,
        out_shape=jax.ShapeDtypeStruct((N, C, HW), x.dtype),
        grid_spec=grid_spec,
        # Only alias when the caller actually donates x; otherwise XLA would
        # insert a defensive copy and add HBM traffic.
        input_output_aliases=({0: 0} if donate_x else {}),
        compiler_params=pltpu.CompilerParams(
            dimension_semantics=("parallel", "parallel", "parallel"),
            vmem_limit_bytes=int(min(64 * 1024 * 1024, cap // 2))),
    )(x3, b2)
    return out3.reshape(N, C, H, W)


if __name__ == "__main__":
    key = jax.random.PRNGKey(0)
    kx, kb = jax.random.split(key)

    N, C, H, W = 2, 4, 16, 16        # input
    Hb, Wb = 8, 8                    # Bias2d(dim=4, 8, 8)

    x = jax.random.normal(kx, (N, C, H, W), dtype=jnp.float32)
    # deterministic stand-in for nn.init.normal_(self.bias)
    bias = jax.random.normal(kb, (1, C, Hb, Wb), dtype=jnp.float32)

    out = jax.block_until_ready(bias2d_forward(x, bias))

    # pure-JAX reference using the same (exact) interpolation matrices
    wh = jnp.asarray(_bicubic_weight_matrix(H, Hb))
    ww = jnp.asarray(_bicubic_weight_matrix(W, Wb))
    resized_ref = jnp.einsum('hj,cjk,wk->chw', wh, bias[0], ww)
    ref = x + resized_ref[None]

    assert out.shape == (N, C, H, W) and out.dtype == x.dtype
    assert jnp.allclose(out, ref, atol=1e-4, rtol=1e-4)

    # same-size path (module skips interpolation): pure broadcast add
    x_same = jax.random.normal(kx, (N, C, Hb, Wb), dtype=jnp.float32)
    out_same = jax.block_until_ready(bias2d_forward(x_same, bias))
    assert jnp.allclose(out_same, x_same + bias, atol=1e-6, rtol=1e-6)

    print("KERNEL_OK")
</pallas_src>

<mosaic_0001>
module attributes {stable_mosaic.version = 11 : i64} {
  func.func @_resize_kernel(%arg0: i32, %arg1: i32, %arg2: memref<4x64xf32, #tpu.memory_space<vmem>>, %arg3: memref<64x256xf32, #tpu.memory_space<vmem>>, %arg4: memref<4x256xf32, #tpu.memory_space<vmem>>) attributes {dimension_semantics = [#tpu.dimension_semantics<parallel>, #tpu.dimension_semantics<parallel>], iteration_bounds = array<i64: 1, 1>, scalar_prefetch = 0 : i64, scratch_operands = 0 : i64, tpu.core_type = #tpu.core_type<tc>, window_params = [{transform_indices = @transform_0, window_bounds = array<i64: 4, 64>}, {transform_indices = @transform_1, window_bounds = array<i64: 64, 256>}, {transform_indices = @transform_2, window_bounds = array<i64: 4, 256>}]} {
    %c0 = arith.constant 0 : index
    %c0_0 = arith.constant 0 : index
    %0 = vector.load %arg2[%c0, %c0_0] : memref<4x64xf32, #tpu.memory_space<vmem>>, vector<4x64xf32>
    %c0_1 = arith.constant 0 : index
    %c0_2 = arith.constant 0 : index
    %1 = vector.load %arg3[%c0_1, %c0_2] : memref<64x256xf32, #tpu.memory_space<vmem>>, vector<64x256xf32>
    %cst = arith.constant dense<0.000000e+00> : vector<4x256xf32>
    %2 = tpu.matmul %0, %1, %cst {dimension_numbers = #tpu.dot_dimension_numbers<[1], [0], [0], [1], [0, 0, 1, 1], [], []>} : vector<4x64xf32>, vector<64x256xf32>, vector<4x256xf32> -> vector<4x256xf32>
    %c0_3 = arith.constant 0 : index
    %c0_4 = arith.constant 0 : index
    %3 = vector.load %arg4[%c0_3, %c0_4] : memref<4x256xf32, #tpu.memory_space<vmem>>, vector<4x256xf32>
    tpu.vector_store %arg4[%c0_3, %c0_4], %2 {strides = array<i32>} : memref<4x256xf32, #tpu.memory_space<vmem>>, vector<4x256xf32>,
    return
  }
  func.func @transform_0(%arg0: i32, %arg1: i32) -> (i32, i32) {
    %c0_i32 = arith.constant 0 : i32
    %c0_i32_0 = arith.constant 0 : i32
    return %arg1, %c0_i32 : i32, i32
  }
  func.func @transform_1(%arg0: i32, %arg1: i32) -> (i32, i32) {
    %c0_i32 = arith.constant 0 : i32
    %c0_i32_0 = arith.constant 0 : i32
    return %c0_i32, %arg0 : i32, i32
  }
  func.func @transform_2(%arg0: i32, %arg1: i32) -> (i32, i32) {
    %c0_i32 = arith.constant 0 : i32
    return %arg1, %arg0 : i32, i32
  }
}

</mosaic_0001>

<llo_original>
// kernel: tpu_custom_call.1
$region0: #{tpu_custom_call.1}
  #allocation0 [shape = 'u32[]', space=smem, size = 0x4, offset = 0x4, fixed_abs, tag = 'smem constant byte address 0x4 - core index']
  #allocation1 [shape = 'u32[72,128]{1,0:T(1,128)}', space=vmem, size = 0x9000, scoped, tag = 'internal scratch']
  %s0 = inlined_call_operand.hbm [shape: f32[4,64], index: 0, kind: input, shape index: {}]
  %s1 = inlined_call_operand.hbm [shape: f32[64,256], index: 1, kind: input, shape index: {}]
  %s2 = inlined_call_operand.hbm [shape: f32[4,256], index: 2, kind: output, shape index: {}]
  %s3 = sld [smem:[#allocation0]]
  $region26: #{tpu_custom_call.1} parent=0
    _
  %s5 = ssub.s32 1, %s3
  %s6 = scalar_select 0, %s5, %s3
  $region1: #{tpu_custom_call.1} parent=0
    #allocation2 [shape = 'u8[2048]{0}', space=vmem, size = 0x800, scoped, tag = 'input window, operand 0, single buffered']
    #allocation3 [shape = 's32[1]{0}', space=sflag, size = 0x4, scoped, tag = 'scoped memory for tpu_custom_call.1']
    #allocation4 [shape = 's32[1]{0}', space=sflag, size = 0x4, scoped, tag = 'scoped memory for tpu_custom_call.1']
    #allocation5 [shape = 'u8[65536]{0}', space=vmem, size = 0x10000, scoped, tag = 'input window, operand 1, single buffered']
    #allocation6 [shape = 's32[1]{0}', space=sflag, size = 0x4, scoped, tag = 'scoped memory for tpu_custom_call.1']
    #allocation7 [shape = 'u8[4096]{0}', space=vmem, size = 0x1000, scoped, tag = 'output window, operand 0, single buffered']
    %7 = vsyncpa [#allocation3], 0
    %8 = vsyncpa [#allocation6], 0
    %9 = vsyncpa [#allocation4], 0
    // Predicated region
    $region2: #{tpu_custom_call.1} parent=1 // pred_check
      _
    $region3: #{tpu_custom_call.1} parent=1 // pred_check_branch
      %11 = sbr.rel (0) target = $region5
    $region4: #{tpu_custom_call.1} parent=1 // pred_region
      %13 = vsyncadd [#allocation3], 0
      %s15 = sshll.u32 %s0, 4
      %s16 = int_to_ptr.hbm [resolvable:$true] %s15
      %s17 = sshll.u32 [#allocation2], 4
      %s18 = int_to_ptr.vmem [resolvable:$true] %s17
      %20 = dma.hbm_to_vmem [thread:$0]  %s16, 64, %s18, [#allocation3]
    $region5: #{tpu_custom_call.1} parent=1 // pred_fallthru
      _
    // Predicated region
    $region6: #{tpu_custom_call.1} parent=1 // pred_check
      _
    $region7: #{tpu_custom_call.1} parent=1 // pred_check_branch
      %22 = sbr.rel (0) target = $region9
    $region8: #{tpu_custom_call.1} parent=1 // pred_region
      %24 = vsyncadd [#allocation6], 0
      %s25 = sshll.u32 %s1, 4
      %s26 = int_to_ptr.hbm [resolvable:$true] %s25
      %s27 = sshll.u32 [#allocation5], 4
      %s28 = int_to_ptr.vmem [resolvable:$true] %s27
      %33 = dma.hbm_to_vmem [thread:$0]  %s26, 2048, %s28, [#allocation6], 256, 256, 16
    $region9: #{tpu_custom_call.1} parent=1 // pred_fallthru
      _
    // Predicated region
    $region10: #{tpu_custom_call.1} parent=1 // pred_check
      _
    $region11: #{tpu_custom_call.1} parent=1 // pred_check_branch
      %35 = sbr.rel (0) target = $region13
    $region12: #{tpu_custom_call.1} parent=1 // pred_region
      %37 = dma.done [#allocation3], 64
    $region13: #{tpu_custom_call.1} parent=1 // pred_fallthru
      _
    // Predicated region
    $region14: #{tpu_custom_call.1} parent=1 // pred_check
      _
    $region15: #{tpu_custom_call.1} parent=1 // pred_check_branch
      %39 = sbr.rel (0) target = $region17
    $region16: #{tpu_custom_call.1} parent=1 // pred_region
      %41 = dma.done [#allocation6], 2048
    $region17: #{tpu_custom_call.1} parent=1 // pred_fallthru
      _
    %v42 = vld [vmem:[#allocation2] sm:$0xf]
    %v43 = vld [vmem:[#allocation5] sm:$0xff]
    %v44 = vld [vmem:[#allocation5 + $0x8] sm:$0xff]
    %v45 = vld [vmem:[#allocation5 + $0x10] sm:$0xff]
    %v46 = vld [vmem:[#allocation5 + $0x18] sm:$0xff]
    %v47 = vld [vmem:[#allocation5 + $0x20] sm:$0xff]
    %v48 = vld [vmem:[#allocation5 + $0x28] sm:$0xff]
    %v49 = vld [vmem:[#allocation5 + $0x30] sm:$0xff]
    %v50 = vld [vmem:[#allocation5 + $0x38] sm:$0xff]
    %v51 = vld [vmem:[#allocation5 + $0x40] sm:$0xff]
    %v52 = vld [vmem:[#allocation5 + $0x48] sm:$0xff]
    %v53 = vld [vmem:[#allocation5 + $0x50] sm:$0xff]
    %v54 = vld [vmem:[#allocation5 + $0x58] sm:$0xff]
    %v55 = vld [vmem:[#allocation5 + $0x60] sm:$0xff]
    %v56 = vld [vmem:[#allocation5 + $0x68] sm:$0xff]
    %v57 = vld [vmem:[#allocation5 + $0x70] sm:$0xff]
    %v58 = vld [vmem:[#allocation5 + $0x78] sm:$0xff]
    %vm59 = vcmask 523264
    %v61 = vsel %vm59, %v42, 0
    %63 = vmatpush.msra.mxu0 0.0
    %64 = vmatpush.msra.mxu0 0.0
    %65 = vmatpush.msra.mxu0 0.0
    %66 = vmatpush.msra.mxu0 0.0
    %67 = vmatpush.msra.mxu0 0.0
    %68 = vmatpush.msra.mxu0 0.0
    %69 = vmatpush.msra.mxu0 0.0
    %70 = vmatpush.msra.mxu0 0.0
    %71 = vmatpush.msra.mxu0 %v57
    %72 = vmatpush.msra.mxu0 %v55
    %73 = vmatpush.msra.mxu0 %v53
    %74 = vmatpush.msra.mxu0 %v51
    %75 = vmatpush.msra.mxu0 %v49
    %76 = vmatpush.msra.mxu0 %v47
    %77 = vmatpush.msra.mxu0 %v45
    %78 = vmatpush.msra.mxu0 %v43
    %79 = vmatmul.f32.gmra.mxu0 %v61
    %v80 = vpop.f32.mrf.mxu0
    %v81 = vadd.f32 0.0, %v80
    %82 = vdwg.mxu0
    %83 = vmatpush.msra.mxu0 0.0
    %84 = vmatpush.msra.mxu0 0.0
    %85 = vmatpush.msra.mxu0 0.0
    %86 = vmatpush.msra.mxu0 0.0
    %87 = vmatpush.msra.mxu0 0.0
    %88 = vmatpush.msra.mxu0 0.0
    %89 = vmatpush.msra.mxu0 0.0
    %90 = vmatpush.msra.mxu0 0.0
    %91 = vmatpush.msra.mxu0 %v58
    %92 = vmatpush.msra.mxu0 %v56
    %93 = vmatpush.msra.mxu0 %v54
    %94 = vmatpush.msra.mxu0 %v52
    %95 = vmatpush.msra.mxu0 %v50
    %96 = vmatpush.msra.mxu0 %v48
    %97 = vmatpush.msra.mxu0 %v46
    %98 = vmatpush.msra.mxu0 %v44
    %99 = vmatmul.f32.gmra.mxu0 %v61
    %v100 = vpop.f32.mrf.mxu0
    %v101 = vadd.f32 0.0, %v100
    %102 = vdwg.mxu0
    %v105 = vrot.slane %v101, 4
    %vm106 = vcmask 1043456
    %v107 = vsel %vm106, %v81, %v105
    %109 = vst [vmem:[#allocation7] sm:$0xff] %v107
    // Predicated region
    $region18: #{tpu_custom_call.1} parent=1 // pred_check
      _
    $region19: #{tpu_custom_call.1} parent=1 // pred_check_branch
      %111 = sbr.rel (0) target = $region21
    $region20: #{tpu_custom_call.1} parent=1 // pred_region
      %113 = vsyncadd [#allocation4], 0
      %s115 = sshll.u32 [#allocation7], 4
      %s116 = int_to_ptr.vmem [resolvable:$true] %s115
      %s117 = sshll.u32 %s2, 4
      %s118 = int_to_ptr.hbm [resolvable:$true] %s117
      %120 = dma.vmem_to_hbm [thread:$0]  %s116, 128, %s118, [#allocation4]
    $region21: #{tpu_custom_call.1} parent=1 // pred_fallthru
      _
    // Predicated region
    $region22: #{tpu_custom_call.1} parent=1 // pred_check
      _
    $region23: #{tpu_custom_call.1} parent=1 // pred_check_branch
      %122 = sbr.rel (0) target = $region25
    $region24: #{tpu_custom_call.1} parent=1 // pred_region
      %124 = dma.done [#allocation4], 128
    $region25: #{tpu_custom_call.1} parent=1 // pred_fallthru
      _
    %125 = vsyncpa [#allocation3], 1
    %126 = vsyncpa [#allocation6], 1
    %127 = vsyncpa [#allocation4], 1

</llo_original>
